<compile_context>
chip_gen: v5e
topology: v5e:2x2
jax: 0.10.0
libtpu: 0.0.40
codegen_flags: <defaults>
</compile_context>

<pallas_src>
import functools

import jax
import jax.numpy as jnp
from jax.experimental import pallas as pl
from jax.experimental.pallas import tpu as pltpu


def _cnn_block_kernel(patches_ref, w_ref, b_ref, g_ref, be_ref, o_ref, *, m, eps):
    """Fused conv3x3(+bias) -> maxpool2x2 -> BatchNorm2d(train) -> ReLU.

    patches_ref: (4*m, Kp) bf16  im2col rows ordered (pool_member, n, hp, wp)
    w_ref      : (Kp, Cp)  bf16  im2col weights (K and Cout zero-padded to 128)
    b_ref      : (1, Cp)   f32   conv bias (lane-padded)
    g_ref      : (1, Cp)   f32   BN gamma (lane-padded)
    be_ref     : (1, Cp)   f32   BN beta (lane-padded)
    o_ref      : (m, Cp)   f32   output rows ordered (n, hp, wp)
    """
    # One MXU matmul, K padded to a full 128-lane slab, bf16 in / f32 acc.
    acc = jnp.dot(patches_ref[...], w_ref[...],
                  preferred_element_type=jnp.float32)          # (4*m, Cp)
    acc = acc + b_ref[...]                                     # bias broadcast

    # 2x2 stride-2 max-pool: the four pool members are contiguous, tile-aligned
    # m-row slabs (no strided loads, no lane-widening reshapes, pure VPU max).
    p01 = jnp.maximum(acc[0 * m:1 * m], acc[1 * m:2 * m])
    p23 = jnp.maximum(acc[2 * m:3 * m], acc[3 * m:4 * m])
    pooled = jnp.maximum(p01, p23)                             # (m, Cp)

    # BatchNorm2d training-mode statistics (biased, over batch+spatial per
    # channel), fully resident in VMEM — no HBM round-trip, no second kernel.
    mean = jnp.mean(pooled, axis=0, keepdims=True)             # (1, Cp)
    centered = pooled - mean
    var = jnp.mean(centered * centered, axis=0, keepdims=True)  # (1, Cp)
    scale = g_ref[...] * jax.lax.rsqrt(var + eps)              # (1, Cp)
    shift = be_ref[...] - mean * scale

    # Fused BN-apply + ReLU, lane-dense (Cp = 128) unmasked store.
    o_ref[...] = jnp.maximum(pooled * scale + shift, 0.0)


@functools.partial(jax.jit, static_argnames=("eps",))
def cnn_block_forward(x_nchw, w_oihw, bias, gamma, beta, eps=1e-5):
    """Matches CNNBlock.forward (train-mode BN). Input/output are NCHW."""
    N, Cin, H, W = x_nchw.shape
    Cout = w_oihw.shape[0]
    assert H % 2 == 0 and W % 2 == 0, "MaxPool2d(2,2) path assumes even H, W"
    Hp, Wp = H // 2, W // 2
    LANE = 128
    K = 9 * Cin
    Kp = max(LANE, ((K + LANE - 1) // LANE) * LANE)
    Cp = max(LANE, ((Cout + LANE - 1) // LANE) * LANE)
    m = N * Hp * Wp

    # ---- wrapper-side layout glue (fuses with the first HBM pass over x):
    # NCHW -> NHWC, zero-pad, im2col, pool-member-major row ordering, K lane
    # padding, bf16 cast for the MXU.
    # TODO(synk): before scaling to production sizes (H,W >= 128, Cin >= 64),
    # switch to a row-tiled grid with a 1-row halo so patches/acc stay within
    # v7x's 64 MiB VMEM and the pipeline can double-buffer.
    x_nhwc = jnp.transpose(x_nchw, (0, 2, 3, 1))
    x_pad = jnp.pad(x_nhwc, ((0, 0), (1, 1), (1, 1), (0, 0)))
    cols = [x_pad[:, dy:dy + H, dx:dx + W, :]
            for dy in range(3) for dx in range(3)]
    patches = jnp.concatenate(cols, axis=-1)                   # (N, H, W, 9*Cin)
    patches = patches.reshape(N, Hp, 2, Wp, 2, K)
    patches = jnp.transpose(patches, (2, 4, 0, 1, 3, 5))       # (2,2,N,Hp,Wp,K)
    patches = patches.reshape(4 * m, K)
    patches = jnp.pad(patches, ((0, 0), (0, Kp - K))).astype(jnp.bfloat16)

    # weights: (Cout,Cin,3,3) -> (ky,kx,Cin,Cout) -> (9*Cin,Cout) -> zero-pad.
    w_taps = jnp.transpose(w_oihw, (2, 3, 1, 0)).reshape(K, Cout)
    w_p = jnp.zeros((Kp, Cp), jnp.bfloat16).at[:K, :Cout].set(
        w_taps.astype(jnp.bfloat16))
    b_p = jnp.zeros((1, Cp), jnp.float32).at[0, :Cout].set(
        bias.astype(jnp.float32))
    g_p = jnp.zeros((1, Cp), jnp.float32).at[0, :Cout].set(
        gamma.astype(jnp.float32))
    be_p = jnp.zeros((1, Cp), jnp.float32).at[0, :Cout].set(
        beta.astype(jnp.float32))

    # TODO(synk): BatchNorm2d running_mean/running_var buffer updates (a
    # training-time side effect) are not emitted; they do not affect the
    # forward output.
    kernel = functools.partial(_cnn_block_kernel, m=m, eps=float(eps))
    out_p = pl.pallas_call(
        kernel,
        out_shape=jax.ShapeDtypeStruct((m, Cp), jnp.float32),
        grid=(1,),
        in_specs=[
            pl.BlockSpec((4 * m, Kp), lambda i: (0, 0)),
            pl.BlockSpec((Kp, Cp), lambda i: (0, 0)),
            pl.BlockSpec((1, Cp), lambda i: (0, 0)),
            pl.BlockSpec((1, Cp), lambda i: (0, 0)),
            pl.BlockSpec((1, Cp), lambda i: (0, 0)),
        ],
        out_specs=pl.BlockSpec((m, Cp), lambda i: (0, 0)),
        compiler_params=pltpu.CompilerParams(
            dimension_semantics=("arbitrary",)),
    )(patches, w_p, b_p, g_p, be_p)

    # ---- output glue: drop channel padding, (n,hp,wp,c) -> NCHW ----
    out_nhwc = out_p.reshape(N, Hp, Wp, Cp)[..., :Cout]
    return jnp.transpose(out_nhwc, (0, 3, 1, 2))


def _reference(x_nchw, w_oihw, bias, gamma, beta, eps=1e-5):
    """Pure-JAX reference reproducing the PyTorch forward (train-mode BN)."""
    conv = jax.lax.conv_general_dilated(
        x_nchw.astype(jnp.float32), w_oihw.astype(jnp.float32),
        window_strides=(1, 1), padding="SAME",
        dimension_numbers=("NCHW", "OIHW", "NCHW"),
        precision=jax.lax.Precision.HIGHEST)
    conv = conv + bias.reshape(1, -1, 1, 1)
    pooled = jax.lax.reduce_window(conv, -jnp.inf, jax.lax.max,
                                   (1, 1, 2, 2), (1, 1, 2, 2), "VALID")
    mean = pooled.mean(axis=(0, 2, 3), keepdims=True)
    var = ((pooled - mean) ** 2).mean(axis=(0, 2, 3), keepdims=True)
    xhat = (pooled - mean) / jnp.sqrt(var + eps)
    y = xhat * gamma.reshape(1, -1, 1, 1) + beta.reshape(1, -1, 1, 1)
    return jnp.maximum(y, 0.0)


if __name__ == "__main__":
    # CNNBlock(input_dim=4, output_dim=8), x: (N=2, C=4, H=16, W=16)
    input_dim, output_dim = 4, 8
    key = jax.random.PRNGKey(0)
    kx, kw, kb, kg, kbe = jax.random.split(key, 5)

    x = jax.random.normal(kx, (2, input_dim, 16, 16), jnp.float32)
    conv_w = 0.1 * jax.random.normal(kw, (output_dim, input_dim, 3, 3), jnp.float32)
    conv_b = 0.1 * jax.random.normal(kb, (output_dim,), jnp.float32)
    bn_gamma = 1.0 + 0.1 * jax.random.normal(kg, (output_dim,), jnp.float32)
    bn_beta = 0.1 * jax.random.normal(kbe, (output_dim,), jnp.float32)

    out = cnn_block_forward(x, conv_w, conv_b, bn_gamma, bn_beta)
    out = jax.block_until_ready(out)

    ref = _reference(x, conv_w, conv_b, bn_gamma, bn_beta)
    assert out.shape == ref.shape == (2, output_dim, 8, 8), (out.shape, ref.shape)
    # Tolerance reflects intentional bf16 MXU inputs (f32 accumulation) vs the
    # Precision.HIGHEST f32 reference.
    assert jnp.allclose(out, ref, atol=2e-2, rtol=2e-2), float(
        jnp.max(jnp.abs(out - ref)))

    print("KERNEL_OK")
</pallas_src>

<mosaic_0001>
module attributes {stable_mosaic.version = 11 : i64} {
  func.func @_cnn_block_kernel(%arg0: i32, %arg1: memref<512x128xbf16, #tpu.memory_space<vmem>>, %arg2: memref<128x128xbf16, #tpu.memory_space<vmem>>, %arg3: memref<1x128xf32, #tpu.memory_space<vmem>>, %arg4: memref<1x128xf32, #tpu.memory_space<vmem>>, %arg5: memref<1x128xf32, #tpu.memory_space<vmem>>, %arg6: memref<128x128xf32, #tpu.memory_space<vmem>>) attributes {dimension_semantics = [#tpu.dimension_semantics<arbitrary>], iteration_bounds = array<i64: 1>, scalar_prefetch = 0 : i64, scratch_operands = 0 : i64, tpu.core_type = #tpu.core_type<tc>, window_params = [{pipeline_mode = #tpu.pipeline_mode<synchronous>, transform_indices = @transform_0, window_bounds = array<i64: 512, 128>}, {pipeline_mode = #tpu.pipeline_mode<synchronous>, transform_indices = @transform_1, window_bounds = array<i64: 128, 128>}, {pipeline_mode = #tpu.pipeline_mode<synchronous>, transform_indices = @transform_2, window_bounds = array<i64: 1, 128>}, {pipeline_mode = #tpu.pipeline_mode<synchronous>, transform_indices = @transform_3, window_bounds = array<i64: 1, 128>}, {pipeline_mode = #tpu.pipeline_mode<synchronous>, transform_indices = @transform_4, window_bounds = array<i64: 1, 128>}, {pipeline_mode = #tpu.pipeline_mode<synchronous>, transform_indices = @transform_5, window_bounds = array<i64: 128, 128>}]} {
    %c0 = arith.constant 0 : index
    %c0_0 = arith.constant 0 : index
    %0 = vector.load %arg1[%c0, %c0_0] : memref<512x128xbf16, #tpu.memory_space<vmem>>, vector<512x128xbf16>
    %c0_1 = arith.constant 0 : index
    %c0_2 = arith.constant 0 : index
    %1 = vector.load %arg2[%c0_1, %c0_2] : memref<128x128xbf16, #tpu.memory_space<vmem>>, vector<128x128xbf16>
    %cst = arith.constant dense<0.000000e+00> : vector<512x128xf32>
    %2 = tpu.matmul %0, %1, %cst {dimension_numbers = #tpu.dot_dimension_numbers<[1], [0], [0], [1], [0, 0, 1, 1], [], []>} : vector<512x128xbf16>, vector<128x128xbf16>, vector<512x128xf32> -> vector<512x128xf32>
    %c0_3 = arith.constant 0 : index
    %c0_4 = arith.constant 0 : index
    %3 = vector.load %arg3[%c0_3, %c0_4] : memref<1x128xf32, #tpu.memory_space<vmem>>, vector<1x128xf32>
    %4 = vector.broadcast %3 : vector<1x128xf32> to vector<512x128xf32>
    %5 = arith.addf %2, %4 : vector<512x128xf32>
    %6 = vector.extract_strided_slice %5 {offsets = [0, 0], sizes = [128, 128], strides = [1, 1]} : vector<512x128xf32> to vector<128x128xf32>
    %7 = vector.extract_strided_slice %5 {offsets = [128, 0], sizes = [128, 128], strides = [1, 1]} : vector<512x128xf32> to vector<128x128xf32>
    %8 = arith.maximumf %6, %7 : vector<128x128xf32>
    %9 = vector.extract_strided_slice %5 {offsets = [256, 0], sizes = [128, 128], strides = [1, 1]} : vector<512x128xf32> to vector<128x128xf32>
    %10 = vector.extract_strided_slice %5 {offsets = [384, 0], sizes = [128, 128], strides = [1, 1]} : vector<512x128xf32> to vector<128x128xf32>
    %11 = arith.maximumf %9, %10 : vector<128x128xf32>
    %12 = arith.maximumf %8, %11 : vector<128x128xf32>
    %cst_5 = arith.constant dense<0.000000e+00> : vector<128xf32>
    %13 = vector.multi_reduction <add>, %12, %cst_5 [0] : vector<128x128xf32> to vector<128xf32>
    %14 = vector.shape_cast %13 : vector<128xf32> to vector<1x128xf32>
    %cst_6 = arith.constant 1.280000e+02 : f32
    %15 = vector.broadcast %cst_6 : f32 to vector<1x128xf32>
    %16 = arith.divf %14, %15 : vector<1x128xf32>
    %17 = vector.broadcast %16 : vector<1x128xf32> to vector<128x128xf32>
    %18 = arith.subf %12, %17 : vector<128x128xf32>
    %19 = arith.mulf %18, %18 : vector<128x128xf32>
    %cst_7 = arith.constant dense<0.000000e+00> : vector<128xf32>
    %20 = vector.multi_reduction <add>, %19, %cst_7 [0] : vector<128x128xf32> to vector<128xf32>
    %21 = vector.shape_cast %20 : vector<128xf32> to vector<1x128xf32>
    %cst_8 = arith.constant 1.280000e+02 : f32
    %22 = vector.broadcast %cst_8 : f32 to vector<1x128xf32>
    %23 = arith.divf %21, %22 : vector<1x128xf32>
    %c0_9 = arith.constant 0 : index
    %c0_10 = arith.constant 0 : index
    %24 = vector.load %arg4[%c0_9, %c0_10] : memref<1x128xf32, #tpu.memory_space<vmem>>, vector<1x128xf32>
    %cst_11 = arith.constant 9.99999974E-6 : f32
    %25 = vector.broadcast %cst_11 : f32 to vector<1x128xf32>
    %26 = arith.addf %23, %25 : vector<1x128xf32>
    %27 = math.rsqrt %26 : vector<1x128xf32>
    %28 = arith.mulf %24, %27 : vector<1x128xf32>
    %c0_12 = arith.constant 0 : index
    %c0_13 = arith.constant 0 : index
    %29 = vector.load %arg5[%c0_12, %c0_13] : memref<1x128xf32, #tpu.memory_space<vmem>>, vector<1x128xf32>
    %30 = arith.mulf %16, %28 : vector<1x128xf32>
    %31 = arith.subf %29, %30 : vector<1x128xf32>
    %32 = vector.broadcast %28 : vector<1x128xf32> to vector<128x128xf32>
    %33 = arith.mulf %12, %32 : vector<128x128xf32>
    %34 = vector.broadcast %31 : vector<1x128xf32> to vector<128x128xf32>
    %35 = arith.addf %33, %34 : vector<128x128xf32>
    %cst_14 = arith.constant 0.000000e+00 : f32
    %36 = vector.broadcast %cst_14 : f32 to vector<128x128xf32>
    %37 = arith.maximumf %35, %36 : vector<128x128xf32>
    %c0_15 = arith.constant 0 : index
    %c0_16 = arith.constant 0 : index
    %38 = vector.load %arg6[%c0_15, %c0_16] : memref<128x128xf32, #tpu.memory_space<vmem>>, vector<128x128xf32>
    tpu.vector_store %arg6[%c0_15, %c0_16], %37 {strides = array<i32>} : memref<128x128xf32, #tpu.memory_space<vmem>>, vector<128x128xf32>,
    return
  }
  func.func @transform_0(%arg0: i32) -> (i32, i32) {
    %c0_i32 = arith.constant 0 : i32
    %c0_i32_0 = arith.constant 0 : i32
    %c0_i32_1 = arith.constant 0 : i32
    return %c0_i32, %c0_i32_0 : i32, i32
  }
  func.func @transform_1(%arg0: i32) -> (i32, i32) {
    %c0_i32 = arith.constant 0 : i32
    %c0_i32_0 = arith.constant 0 : i32
    %c0_i32_1 = arith.constant 0 : i32
    return %c0_i32, %c0_i32_0 : i32, i32
  }
  func.func @transform_2(%arg0: i32) -> (i32, i32) {
    %c0_i32 = arith.constant 0 : i32
    %c0_i32_0 = arith.constant 0 : i32
    %c0_i32_1 = arith.constant 0 : i32
    return %c0_i32, %c0_i32_0 : i32, i32
  }
  func.func @transform_3(%arg0: i32) -> (i32, i32) {
    %c0_i32 = arith.constant 0 : i32
    %c0_i32_0 = arith.constant 0 : i32
    %c0_i32_1 = arith.constant 0 : i32
    return %c0_i32, %c0_i32_0 : i32, i32
  }
  func.func @transform_4(%arg0: i32) -> (i32, i32) {
    %c0_i32 = arith.constant 0 : i32
    %c0_i32_0 = arith.constant 0 : i32
    %c0_i32_1 = arith.constant 0 : i32
    return %c0_i32, %c0_i32_0 : i32, i32
  }
  func.func @transform_5(%arg0: i32) -> (i32, i32) {
    %c0_i32 = arith.constant 0 : i32
    %c0_i32_0 = arith.constant 0 : i32
    %c0_i32_1 = arith.constant 0 : i32
    return %c0_i32, %c0_i32_0 : i32, i32
  }
}

</mosaic_0001>

<llo_original>
// kernel: cnn_block_forward.1
$region0: #{cnn_block_forward.1}
  #allocation0 [shape = 'u32[]', space=smem, size = 0x4, offset = 0x4, fixed_abs, tag = 'smem constant byte address 0x4 - core index']
  #allocation1 [shape = 'u32[72,128]{1,0:T(1,128)}', space=vmem, size = 0x9000, scoped, tag = 'internal scratch']
  %s0 = inlined_call_operand.vmem [shape: bf16[512,128], index: 0, kind: input, shape index: {}]
  %s1 = inlined_call_operand.vmem [shape: bf16[128,128], index: 1, kind: input, shape index: {}]
  %s2 = inlined_call_operand.vmem [shape: f32[1,128], index: 2, kind: input, shape index: {}]
  %s3 = inlined_call_operand.vmem [shape: f32[1,128], index: 3, kind: input, shape index: {}]
  %s4 = inlined_call_operand.vmem [shape: f32[1,128], index: 4, kind: input, shape index: {}]
  %s5 = inlined_call_operand.vmem [shape: f32[128,128], index: 5, kind: output, shape index: {}]
  %s6 = sld [smem:[#allocation0]]
  $region30: #{cnn_block_forward.1} parent=0
    _
  %s8 = ssub.s32 1, %s6
  %s9 = scalar_select 0, %s8, %s6
  // Predicated region
  $region2: #{cnn_block_forward.1} parent=0 // pred_check
    _
  $region3: #{cnn_block_forward.1} parent=0 // pred_check_branch
    %11 = sbr.rel (0) target = $region5
  $region4: #{cnn_block_forward.1} parent=0 // pred_region
    _
  $region5: #{cnn_block_forward.1} parent=0 // pred_fallthru
    _
  // Predicated region
  $region6: #{cnn_block_forward.1} parent=0 // pred_check
    _
  $region7: #{cnn_block_forward.1} parent=0 // pred_check_branch
    %13 = sbr.rel (0) target = $region9
  $region8: #{cnn_block_forward.1} parent=0 // pred_region
    _
  $region9: #{cnn_block_forward.1} parent=0 // pred_fallthru
    _
  // Predicated region
  $region10: #{cnn_block_forward.1} parent=0 // pred_check
    _
  $region11: #{cnn_block_forward.1} parent=0 // pred_check_branch
    %15 = sbr.rel (0) target = $region13
  $region12: #{cnn_block_forward.1} parent=0 // pred_region
    _
  $region13: #{cnn_block_forward.1} parent=0 // pred_fallthru
    _
  // Predicated region
  $region14: #{cnn_block_forward.1} parent=0 // pred_check
    _
  $region15: #{cnn_block_forward.1} parent=0 // pred_check_branch
    %17 = sbr.rel (0) target = $region17
  $region16: #{cnn_block_forward.1} parent=0 // pred_region
    _
  $region17: #{cnn_block_forward.1} parent=0 // pred_fallthru
    _
  // Predicated region
  $region18: #{cnn_block_forward.1} parent=0 // pred_check
    _
  $region19: #{cnn_block_forward.1} parent=0 // pred_check_branch
    %19 = sbr.rel (0) target = $region21
  $region20: #{cnn_block_forward.1} parent=0 // pred_region
    _
  $region21: #{cnn_block_forward.1} parent=0 // pred_fallthru
    _
  %v20 = vld [vmem:[%s0] sm:$0xf]
  %v21 = vld [vmem:[%s0 + $0x4] sm:$0xf]
  %v22 = vld [vmem:[%s0 + $0x8] sm:$0xf]
  %v23 = vld [vmem:[%s0 + $0xc] sm:$0xf]
  %v24 = vld [vmem:[%s0 + $0x10] sm:$0xf]
  %v25 = vld [vmem:[%s0 + $0x14] sm:$0xf]
  %v26 = vld [vmem:[%s0 + $0x18] sm:$0xf]
  %v27 = vld [vmem:[%s0 + $0x1c] sm:$0xf]
  %v28 = vld [vmem:[%s0 + $0x20] sm:$0xf]
  %v29 = vld [vmem:[%s0 + $0x24] sm:$0xf]
  %v30 = vld [vmem:[%s0 + $0x28] sm:$0xf]
  %v31 = vld [vmem:[%s0 + $0x2c] sm:$0xf]
  %v32 = vld [vmem:[%s0 + $0x30] sm:$0xf]
  %v33 = vld [vmem:[%s0 + $0x34] sm:$0xf]
  %v34 = vld [vmem:[%s0 + $0x38] sm:$0xf]
  %v35 = vld [vmem:[%s0 + $0x3c] sm:$0xf]
  %v36 = vld [vmem:[%s0 + $0x40] sm:$0xf]
  %v37 = vld [vmem:[%s0 + $0x44] sm:$0xf]
  %v38 = vld [vmem:[%s0 + $0x48] sm:$0xf]
  %v39 = vld [vmem:[%s0 + $0x4c] sm:$0xf]
  %v40 = vld [vmem:[%s0 + $0x50] sm:$0xf]
  %v41 = vld [vmem:[%s0 + $0x54] sm:$0xf]
  %v42 = vld [vmem:[%s0 + $0x58] sm:$0xf]
  %v43 = vld [vmem:[%s0 + $0x5c] sm:$0xf]
  %v44 = vld [vmem:[%s0 + $0x60] sm:$0xf]
  %v45 = vld [vmem:[%s0 + $0x64] sm:$0xf]
  %v46 = vld [vmem:[%s0 + $0x68] sm:$0xf]
  %v47 = vld [vmem:[%s0 + $0x6c] sm:$0xf]
  %v48 = vld [vmem:[%s0 + $0x70] sm:$0xf]
  %v49 = vld [vmem:[%s0 + $0x74] sm:$0xf]
  %v50 = vld [vmem:[%s0 + $0x78] sm:$0xf]
  %v51 = vld [vmem:[%s0 + $0x7c] sm:$0xf]
  %v52 = vld [vmem:[%s0 + $0x80] sm:$0xf]
  %v53 = vld [vmem:[%s0 + $0x84] sm:$0xf]
  %v54 = vld [vmem:[%s0 + $0x88] sm:$0xf]
  %v55 = vld [vmem:[%s0 + $0x8c] sm:$0xf]
  %v56 = vld [vmem:[%s0 + $0x90] sm:$0xf]
  %v57 = vld [vmem:[%s0 + $0x94] sm:$0xf]
  %v58 = vld [vmem:[%s0 + $0x98] sm:$0xf]
  %v59 = vld [vmem:[%s0 + $0x9c] sm:$0xf]
  %v60 = vld [vmem:[%s0 + $0xa0] sm:$0xf]
  %v61 = vld [vmem:[%s0 + $0xa4] sm:$0xf]
  %v62 = vld [vmem:[%s0 + $0xa8] sm:$0xf]
  %v63 = vld [vmem:[%s0 + $0xac] sm:$0xf]
  %v64 = vld [vmem:[%s0 + $0xb0] sm:$0xf]
  %v65 = vld [vmem:[%s0 + $0xb4] sm:$0xf]
  %v66 = vld [vmem:[%s0 + $0xb8] sm:$0xf]
  %v67 = vld [vmem:[%s0 + $0xbc] sm:$0xf]
  %v68 = vld [vmem:[%s0 + $0xc0] sm:$0xf]
  %v69 = vld [vmem:[%s0 + $0xc4] sm:$0xf]
  %v70 = vld [vmem:[%s0 + $0xc8] sm:$0xf]
  %v71 = vld [vmem:[%s0 + $0xcc] sm:$0xf]
  %v72 = vld [vmem:[%s0 + $0xd0] sm:$0xf]
  %v73 = vld [vmem:[%s0 + $0xd4] sm:$0xf]
  %v74 = vld [vmem:[%s0 + $0xd8] sm:$0xf]
  %v75 = vld [vmem:[%s0 + $0xdc] sm:$0xf]
  %v76 = vld [vmem:[%s0 + $0xe0] sm:$0xf]
  %v77 = vld [vmem:[%s0 + $0xe4] sm:$0xf]
  %v78 = vld [vmem:[%s0 + $0xe8] sm:$0xf]
  %v79 = vld [vmem:[%s0 + $0xec] sm:$0xf]
  %v80 = vld [vmem:[%s0 + $0xf0] sm:$0xf]
  %v81 = vld [vmem:[%s0 + $0xf4] sm:$0xf]
  %v82 = vld [vmem:[%s0 + $0xf8] sm:$0xf]
  %v83 = vld [vmem:[%s0 + $0xfc] sm:$0xf]
  %v84 = vld [vmem:[%s1] sm:$0xf]
  %v85 = vld [vmem:[%s1 + $0x4] sm:$0xf]
  %v86 = vld [vmem:[%s1 + $0x8] sm:$0xf]
  %v87 = vld [vmem:[%s1 + $0xc] sm:$0xf]
  %v88 = vld [vmem:[%s1 + $0x10] sm:$0xf]
  %v89 = vld [vmem:[%s1 + $0x14] sm:$0xf]
  %v90 = vld [vmem:[%s1 + $0x18] sm:$0xf]
  %v91 = vld [vmem:[%s1 + $0x1c] sm:$0xf]
  %v92 = vld [vmem:[%s1 + $0x20] sm:$0xf]
  %v93 = vld [vmem:[%s1 + $0x24] sm:$0xf]
  %v94 = vld [vmem:[%s1 + $0x28] sm:$0xf]
  %v95 = vld [vmem:[%s1 + $0x2c] sm:$0xf]
  %v96 = vld [vmem:[%s1 + $0x30] sm:$0xf]
  %v97 = vld [vmem:[%s1 + $0x34] sm:$0xf]
  %v98 = vld [vmem:[%s1 + $0x38] sm:$0xf]
  %v99 = vld [vmem:[%s1 + $0x3c] sm:$0xf]
  %v100 = vld [vmem:[%s2] sm:$0x1]
  %v102 = vperm.slane %v100, 0
  %v168 = vunpack.c.l.b16 %v20
  %v169 = vunpack.c.l.b16 %v21
  %v170 = vunpack.c.l.b16 %v22
  %v171 = vunpack.c.l.b16 %v23
  %v172 = vunpack.c.l.b16 %v24
  %v173 = vunpack.c.l.b16 %v25
  %v174 = vunpack.c.l.b16 %v26
  %v175 = vunpack.c.l.b16 %v27
  %v176 = vunpack.c.l.b16 %v28
  %v177 = vunpack.c.l.b16 %v29
  %v178 = vunpack.c.l.b16 %v30
  %v179 = vunpack.c.l.b16 %v31
  %v180 = vunpack.c.l.b16 %v32
  %v181 = vunpack.c.l.b16 %v33
  %v182 = vunpack.c.l.b16 %v34
  %v183 = vunpack.c.l.b16 %v35
  %v184 = vunpack.c.l.b16 %v36
  %v185 = vunpack.c.l.b16 %v37
  %v186 = vunpack.c.l.b16 %v38
  %v187 = vunpack.c.l.b16 %v39
  %v188 = vunpack.c.l.b16 %v40
  %v189 = vunpack.c.l.b16 %v41
  %v190 = vunpack.c.l.b16 %v42
  %v191 = vunpack.c.l.b16 %v43
  %v192 = vunpack.c.l.b16 %v44
  %v193 = vunpack.c.l.b16 %v45
  %v194 = vunpack.c.l.b16 %v46
  %v195 = vunpack.c.l.b16 %v47
  %v196 = vunpack.c.l.b16 %v48
  %v197 = vunpack.c.l.b16 %v49
  %v198 = vunpack.c.l.b16 %v50
  %v199 = vunpack.c.l.b16 %v51
  %v200 = vunpack.c.l.b16 %v52
  %v201 = vunpack.c.l.b16 %v53
  %v202 = vunpack.c.l.b16 %v54
  %v203 = vunpack.c.l.b16 %v55
  %v204 = vunpack.c.l.b16 %v56
  %v205 = vunpack.c.l.b16 %v57
  %v206 = vunpack.c.l.b16 %v58
  %v207 = vunpack.c.l.b16 %v59
  %v208 = vunpack.c.l.b16 %v60
  %v209 = vunpack.c.l.b16 %v61
  %v210 = vunpack.c.l.b16 %v62
  %v211 = vunpack.c.l.b16 %v63
  %v212 = vunpack.c.l.b16 %v64
  %v213 = vunpack.c.l.b16 %v65
  %v214 = vunpack.c.l.b16 %v66
  %v215 = vunpack.c.l.b16 %v67
  %v216 = vunpack.c.l.b16 %v68
  %v217 = vunpack.c.l.b16 %v69
  %v218 = vunpack.c.l.b16 %v70
  %v219 = vunpack.c.l.b16 %v71
  %v220 = vunpack.c.l.b16 %v72
  %v221 = vunpack.c.l.b16 %v73
  %v222 = vunpack.c.l.b16 %v74
  %v223 = vunpack.c.l.b16 %v75
  %v224 = vunpack.c.l.b16 %v76
  %v225 = vunpack.c.l.b16 %v77
  %v226 = vunpack.c.l.b16 %v78
  %v227 = vunpack.c.l.b16 %v79
  %v228 = vunpack.c.l.b16 %v80
  %v229 = vunpack.c.l.b16 %v81
  %v230 = vunpack.c.l.b16 %v82
  %v231 = vunpack.c.l.b16 %v83
  %v232 = vpack.c.b16 %v169, %v168
  %v233 = vpack.c.b16 %v171, %v170
  %v234 = vpack.c.b16 %v173, %v172
  %v235 = vpack.c.b16 %v175, %v174
  %v236 = vpack.c.b16 %v177, %v176
  %v237 = vpack.c.b16 %v179, %v178
  %v238 = vpack.c.b16 %v181, %v180
  %v239 = vpack.c.b16 %v183, %v182
  %v240 = vpack.c.b16 %v185, %v184
  %v241 = vpack.c.b16 %v187, %v186
  %v242 = vpack.c.b16 %v189, %v188
  %v243 = vpack.c.b16 %v191, %v190
  %v244 = vpack.c.b16 %v193, %v192
  %v245 = vpack.c.b16 %v195, %v194
  %v246 = vpack.c.b16 %v197, %v196
  %v247 = vpack.c.b16 %v199, %v198
  %v248 = vpack.c.b16 %v201, %v200
  %v249 = vpack.c.b16 %v203, %v202
  %v250 = vpack.c.b16 %v205, %v204
  %v251 = vpack.c.b16 %v207, %v206
  %v252 = vpack.c.b16 %v209, %v208
  %v253 = vpack.c.b16 %v211, %v210
  %v254 = vpack.c.b16 %v213, %v212
  %v255 = vpack.c.b16 %v215, %v214
  %v256 = vpack.c.b16 %v217, %v216
  %v257 = vpack.c.b16 %v219, %v218
  %v258 = vpack.c.b16 %v221, %v220
  %v259 = vpack.c.b16 %v223, %v222
  %v260 = vpack.c.b16 %v225, %v224
  %v261 = vpack.c.b16 %v227, %v226
  %v262 = vpack.c.b16 %v229, %v228
  %v263 = vpack.c.b16 %v231, %v230
  %v312 = vunpack.c.l.b16 %v84
  %v313 = vunpack.c.l.b16 %v85
  %v314 = vunpack.c.l.b16 %v86
  %v315 = vunpack.c.l.b16 %v87
  %v316 = vunpack.c.l.b16 %v88
  %v317 = vunpack.c.l.b16 %v89
  %v318 = vunpack.c.l.b16 %v90
  %v319 = vunpack.c.l.b16 %v91
  %v320 = vunpack.c.l.b16 %v92
  %v321 = vunpack.c.l.b16 %v93
  %v322 = vunpack.c.l.b16 %v94
  %v323 = vunpack.c.l.b16 %v95
  %v324 = vunpack.c.l.b16 %v96
  %v325 = vunpack.c.l.b16 %v97
  %v326 = vunpack.c.l.b16 %v98
  %v327 = vunpack.c.l.b16 %v99
  %v328 = vpack.c.b16 %v313, %v312
  %v329 = vpack.c.b16 %v315, %v314
  %v330 = vpack.c.b16 %v317, %v316
  %v331 = vpack.c.b16 %v319, %v318
  %v332 = vpack.c.b16 %v321, %v320
  %v333 = vpack.c.b16 %v323, %v322
  %v334 = vpack.c.b16 %v325, %v324
  %v335 = vpack.c.b16 %v327, %v326
  %344 = vmatpush.bf16.msra.mxu0 %v335
  %345 = vmatpush.bf16.msra.mxu0 %v334
  %346 = vmatpush.bf16.msra.mxu0 %v333
  %347 = vmatpush.bf16.msra.mxu0 %v332
  %348 = vmatpush.bf16.msra.mxu0 %v331
  %349 = vmatpush.bf16.msra.mxu0 %v330
  %350 = vmatpush.bf16.msra.mxu0 %v329
  %351 = vmatpush.bf16.msra.mxu0 %v328
  %352 = vmatmul.bf16.gmra.mxu0 %v232
  %v353 = vpop.f32.mrf.mxu0
  %v354 = vadd.f32 %v102, %v353
  %v355 = vpop.f32.mrf.mxu0
  %v356 = vadd.f32 %v102, %v355
  %357 = vmatmul.bf16.gmra.mxu0 %v233
  %v358 = vpop.f32.mrf.mxu0
  %v359 = vadd.f32 %v102, %v358
  %v360 = vpop.f32.mrf.mxu0
  %v361 = vadd.f32 %v102, %v360
  %362 = vmatmul.bf16.gmra.mxu0 %v234
  %v363 = vpop.f32.mrf.mxu0
  %v364 = vadd.f32 %v102, %v363
  %v365 = vpop.f32.mrf.mxu0
  %v366 = vadd.f32 %v102, %v365
  %367 = vmatmul.bf16.gmra.mxu0 %v235
  %v368 = vpop.f32.mrf.mxu0
  %v369 = vadd.f32 %v102, %v368
  %v370 = vpop.f32.mrf.mxu0
  %v371 = vadd.f32 %v102, %v370
  %372 = vmatmul.bf16.gmra.mxu0 %v236
  %v373 = vpop.f32.mrf.mxu0
  %v374 = vadd.f32 %v102, %v373
  %v375 = vpop.f32.mrf.mxu0
  %v376 = vadd.f32 %v102, %v375
  %377 = vmatmul.bf16.gmra.mxu0 %v237
  %v378 = vpop.f32.mrf.mxu0
  %v379 = vadd.f32 %v102, %v378
  %v380 = vpop.f32.mrf.mxu0
  %v381 = vadd.f32 %v102, %v380
  %382 = vmatmul.bf16.gmra.mxu0 %v238
  %v383 = vpop.f32.mrf.mxu0
  %v384 = vadd.f32 %v102, %v383
  %v385 = vpop.f32.mrf.mxu0
  %v386 = vadd.f32 %v102, %v385
  %387 = vmatmul.bf16.gmra.mxu0 %v239
  %v388 = vpop.f32.mrf.mxu0
  %v389 = vadd.f32 %v102, %v388
  %v390 = vpop.f32.mrf.mxu0
  %v391 = vadd.f32 %v102, %v390
  %392 = vmatmul.bf16.gmra.mxu0 %v240
  %v393 = vpop.f32.mrf.mxu0
  %v394 = vadd.f32 %v102, %v393
  %v395 = vpop.f32.mrf.mxu0
  %v396 = vadd.f32 %v102, %v395
  %397 = vmatmul.bf16.gmra.mxu0 %v241
  %v398 = vpop.f32.mrf.mxu0
  %v399 = vadd.f32 %v102, %v398
  %v400 = vpop.f32.mrf.mxu0
  %v401 = vadd.f32 %v102, %v400
  %402 = vmatmul.bf16.gmra.mxu0 %v242
  %v403 = vpop.f32.mrf.mxu0
  %v404 = vadd.f32 %v102, %v403
  %v405 = vpop.f32.mrf.mxu0
  %v406 = vadd.f32 %v102, %v405
  %407 = vmatmul.bf16.gmra.mxu0 %v243
  %v408 = vpop.f32.mrf.mxu0
  %v409 = vadd.f32 %v102, %v408
  %v410 = vpop.f32.mrf.mxu0
  %v411 = vadd.f32 %v102, %v410
  %412 = vmatmul.bf16.gmra.mxu0 %v244
  %v413 = vpop.f32.mrf.mxu0
  %v414 = vadd.f32 %v102, %v413
  %v415 = vpop.f32.mrf.mxu0
  %v416 = vadd.f32 %v102, %v415
  %417 = vmatmul.bf16.gmra.mxu0 %v245
  %v418 = vpop.f32.mrf.mxu0
  %v419 = vadd.f32 %v102, %v418
  %v420 = vpop.f32.mrf.mxu0
  %v421 = vadd.f32 %v102, %v420
  %422 = vmatmul.bf16.gmra.mxu0 %v246
  %v423 = vpop.f32.mrf.mxu0
  %v424 = vadd.f32 %v102, %v423
  %v425 = vpop.f32.mrf.mxu0
  %v426 = vadd.f32 %v102, %v425
  %427 = vmatmul.bf16.gmra.mxu0 %v247
  %v428 = vpop.f32.mrf.mxu0
  %v429 = vadd.f32 %v102, %v428
  %v430 = vpop.f32.mrf.mxu0
  %v431 = vadd.f32 %v102, %v430
  %432 = vmatmul.bf16.gmra.mxu0 %v248
  %v433 = vpop.f32.mrf.mxu0
  %v434 = vadd.f32 %v102, %v433
  %v435 = vpop.f32.mrf.mxu0
  %v436 = vadd.f32 %v102, %v435
  %437 = vmatmul.bf16.gmra.mxu0 %v249
  %v438 = vpop.f32.mrf.mxu0
  %v439 = vadd.f32 %v102, %v438
  %v440 = vpop.f32.mrf.mxu0
  %v441 = vadd.f32 %v102, %v440
  %442 = vmatmul.bf16.gmra.mxu0 %v250
  %v443 = vpop.f32.mrf.mxu0
  %v444 = vadd.f32 %v102, %v443
  %v445 = vpop.f32.mrf.mxu0
  %v446 = vadd.f32 %v102, %v445
  %447 = vmatmul.bf16.gmra.mxu0 %v251
  %v448 = vpop.f32.mrf.mxu0
  %v449 = vadd.f32 %v102, %v448
  %v450 = vpop.f32.mrf.mxu0
  %v451 = vadd.f32 %v102, %v450
  %452 = vmatmul.bf16.gmra.mxu0 %v252
  %v453 = vpop.f32.mrf.mxu0
  %v454 = vadd.f32 %v102, %v453
  %v455 = vpop.f32.mrf.mxu0
  %v456 = vadd.f32 %v102, %v455
  %457 = vmatmul.bf16.gmra.mxu0 %v253
  %v458 = vpop.f32.mrf.mxu0
  %v459 = vadd.f32 %v102, %v458
  %v460 = vpop.f32.mrf.mxu0
  %v461 = vadd.f32 %v102, %v460
  %462 = vmatmul.bf16.gmra.mxu0 %v254
  %v463 = vpop.f32.mrf.mxu0
  %v464 = vadd.f32 %v102, %v463
  %v465 = vpop.f32.mrf.mxu0
  %v466 = vadd.f32 %v102, %v465
  %467 = vmatmul.bf16.gmra.mxu0 %v255
  %v468 = vpop.f32.mrf.mxu0
  %v469 = vadd.f32 %v102, %v468
  %v470 = vpop.f32.mrf.mxu0
  %v471 = vadd.f32 %v102, %v470
  %472 = vmatmul.bf16.gmra.mxu0 %v256
  %v473 = vpop.f32.mrf.mxu0
  %v474 = vadd.f32 %v102, %v473
  %v475 = vpop.f32.mrf.mxu0
  %v476 = vadd.f32 %v102, %v475
  %477 = vmatmul.bf16.gmra.mxu0 %v257
  %v478 = vpop.f32.mrf.mxu0
  %v479 = vadd.f32 %v102, %v478
  %v480 = vpop.f32.mrf.mxu0
  %v481 = vadd.f32 %v102, %v480
  %482 = vmatmul.bf16.gmra.mxu0 %v258
  %v483 = vpop.f32.mrf.mxu0
  %v484 = vadd.f32 %v102, %v483
  %v485 = vpop.f32.mrf.mxu0
  %v486 = vadd.f32 %v102, %v485
  %487 = vmatmul.bf16.gmra.mxu0 %v259
  %v488 = vpop.f32.mrf.mxu0
  %v489 = vadd.f32 %v102, %v488
  %v490 = vpop.f32.mrf.mxu0
  %v491 = vadd.f32 %v102, %v490
  %492 = vmatmul.bf16.gmra.mxu0 %v260
  %v493 = vpop.f32.mrf.mxu0
  %v494 = vadd.f32 %v102, %v493
  %v495 = vpop.f32.mrf.mxu0
  %v496 = vadd.f32 %v102, %v495
  %497 = vmatmul.bf16.gmra.mxu0 %v261
  %v498 = vpop.f32.mrf.mxu0
  %v499 = vadd.f32 %v102, %v498
  %v500 = vpop.f32.mrf.mxu0
  %v501 = vadd.f32 %v102, %v500
  %502 = vmatmul.bf16.gmra.mxu0 %v262
  %v503 = vpop.f32.mrf.mxu0
  %v504 = vadd.f32 %v102, %v503
  %v505 = vpop.f32.mrf.mxu0
  %v506 = vadd.f32 %v102, %v505
  %507 = vmatmul.bf16.gmra.mxu0 %v263
  %v508 = vpop.f32.mrf.mxu0
  %v509 = vadd.f32 %v102, %v508
  %v510 = vpop.f32.mrf.mxu0
  %v511 = vadd.f32 %v102, %v510
  %512 = vdwg.mxu0
  %v513 = vmax.f32 %v354, %v394
  %v514 = vmax.f32 %v356, %v396
  %v515 = vmax.f32 %v359, %v399
  %v516 = vmax.f32 %v361, %v401
  %v517 = vmax.f32 %v364, %v404
  %v518 = vmax.f32 %v366, %v406
  %v519 = vmax.f32 %v369, %v409
  %v520 = vmax.f32 %v371, %v411
  %v521 = vmax.f32 %v374, %v414
  %v522 = vmax.f32 %v376, %v416
  %v523 = vmax.f32 %v379, %v419
  %v524 = vmax.f32 %v381, %v421
  %v525 = vmax.f32 %v384, %v424
  %v526 = vmax.f32 %v386, %v426
  %v527 = vmax.f32 %v389, %v429
  %v528 = vmax.f32 %v391, %v431
  %v529 = vmax.f32 %v434, %v474
  %v530 = vmax.f32 %v436, %v476
  %v531 = vmax.f32 %v439, %v479
  %v532 = vmax.f32 %v441, %v481
  %v533 = vmax.f32 %v444, %v484
  %v534 = vmax.f32 %v446, %v486
  %v535 = vmax.f32 %v449, %v489
  %v536 = vmax.f32 %v451, %v491
  %v537 = vmax.f32 %v454, %v494
  %v538 = vmax.f32 %v456, %v496
  %v539 = vmax.f32 %v459, %v499
  %v540 = vmax.f32 %v461, %v501
  %v541 = vmax.f32 %v464, %v504
  %v542 = vmax.f32 %v466, %v506
  %v543 = vmax.f32 %v469, %v509
  %v544 = vmax.f32 %v471, %v511
  %v545 = vmax.f32 %v513, %v529
  %v546 = vmax.f32 %v514, %v530
  %v547 = vmax.f32 %v515, %v531
  %v548 = vmax.f32 %v516, %v532
  %v549 = vmax.f32 %v517, %v533
  %v550 = vmax.f32 %v518, %v534
  %v551 = vmax.f32 %v519, %v535
  %v552 = vmax.f32 %v520, %v536
  %v553 = vmax.f32 %v521, %v537
  %v554 = vmax.f32 %v522, %v538
  %v555 = vmax.f32 %v523, %v539
  %v556 = vmax.f32 %v524, %v540
  %v557 = vmax.f32 %v525, %v541
  %v558 = vmax.f32 %v526, %v542
  %v559 = vmax.f32 %v527, %v543
  %v560 = vmax.f32 %v528, %v544
  %v561 = vadd.f32 %v545, %v546
  %v562 = vadd.f32 %v561, %v547
  %v563 = vadd.f32 %v562, %v548
  %v564 = vadd.f32 %v563, %v549
  %v565 = vadd.f32 %v564, %v550
  %v566 = vadd.f32 %v565, %v551
  %v567 = vadd.f32 %v566, %v552
  %v568 = vadd.f32 %v567, %v553
  %v569 = vadd.f32 %v568, %v554
  %v570 = vadd.f32 %v569, %v555
  %v571 = vadd.f32 %v570, %v556
  %v572 = vadd.f32 %v571, %v557
  %v573 = vadd.f32 %v572, %v558
  %v574 = vadd.f32 %v573, %v559
  %v575 = vadd.f32 %v574, %v560
  %v576 = vrot.slane %v575, 4
  %v577 = vadd.f32 %v575, %v576
  %v578 = vrot.slane %v577, 2
  %v579 = vadd.f32 %v577, %v578
  %v580 = vrot.slane %v579, 1
  %v581 = vadd.f32 %v579, %v580
  %v582 = vrcp.pop 128.0
  %v583 = vmul.f32 128.0, %v582
  %v584 = vsub.f32 1.0, %v583
  %v585 = vmul.f32 %v582, %v584
  %v586 = vadd.f32 %v582, %v585
  %vm587 = vweird.f32 %v582
  %v588 = vsel %vm587, %v582, %v586
  %v589 = vmul.f32 %v581, %v588
  %v590 = vsub.f32 %v545, %v589
  %v591 = vsub.f32 %v546, %v589
  %v592 = vsub.f32 %v547, %v589
  %v593 = vsub.f32 %v548, %v589
  %v594 = vsub.f32 %v549, %v589
  %v595 = vsub.f32 %v550, %v589
  %v596 = vsub.f32 %v551, %v589
  %v597 = vsub.f32 %v552, %v589
  %v598 = vsub.f32 %v553, %v589
  %v599 = vsub.f32 %v554, %v589
  %v600 = vsub.f32 %v555, %v589
  %v601 = vsub.f32 %v556, %v589
  %v602 = vsub.f32 %v557, %v589
  %v603 = vsub.f32 %v558, %v589
  %v604 = vsub.f32 %v559, %v589
  %v605 = vsub.f32 %v560, %v589
  %v606 = vmul.f32 %v590, %v590
  %v607 = vmul.f32 %v591, %v591
  %v608 = vmul.f32 %v592, %v592
  %v609 = vmul.f32 %v593, %v593
  %v610 = vmul.f32 %v594, %v594
  %v611 = vmul.f32 %v595, %v595
  %v612 = vmul.f32 %v596, %v596
  %v613 = vmul.f32 %v597, %v597
  %v614 = vmul.f32 %v598, %v598
  %v615 = vmul.f32 %v599, %v599
  %v616 = vmul.f32 %v600, %v600
  %v617 = vmul.f32 %v601, %v601
  %v618 = vmul.f32 %v602, %v602
  %v619 = vmul.f32 %v603, %v603
  %v620 = vmul.f32 %v604, %v604
  %v621 = vmul.f32 %v605, %v605
  %v622 = vadd.f32 %v606, %v607
  %v623 = vadd.f32 %v622, %v608
  %v624 = vadd.f32 %v623, %v609
  %v625 = vadd.f32 %v624, %v610
  %v626 = vadd.f32 %v625, %v611
  %v627 = vadd.f32 %v626, %v612
  %v628 = vadd.f32 %v627, %v613
  %v629 = vadd.f32 %v628, %v614
  %v630 = vadd.f32 %v629, %v615
  %v631 = vadd.f32 %v630, %v616
  %v632 = vadd.f32 %v631, %v617
  %v633 = vadd.f32 %v632, %v618
  %v634 = vadd.f32 %v633, %v619
  %v635 = vadd.f32 %v634, %v620
  %v636 = vadd.f32 %v635, %v621
  %v637 = vrot.slane %v636, 4
  %v638 = vadd.f32 %v636, %v637
  %v639 = vrot.slane %v638, 2
  %v640 = vadd.f32 %v638, %v639
  %v641 = vrot.slane %v640, 1
  %v642 = vadd.f32 %v640, %v641
  %v643 = vmul.f32 %v642, %v588
  %v644 = vld [vmem:[%s3] sm:$0x1]
  %v645 = vadd.f32 %v643, 1e-05
  %v646 = vrsqrt.pop %v645
  %v647 = vmul.f32 %v646, %v645
  %v648 = vmul.f32 %v647, %v646
  %v649 = vmul.f32 0.5, %v648
  %v650 = vsub.f32 1.5, %v649
  %v651 = vmul.f32 %v646, %v650
  %vm652 = vweird.f32 %v645
  %vm653 = vweird.f32 %v646
  %vm654 = vmor %vm652, %vm653
  %v655 = vsel %vm654, %v646, %v651
  %v656 = vmul.f32 %v644, %v655
  %v657 = vld [vmem:[%s4] sm:$0x1]
  %v658 = vmul.f32 %v589, %v656
  %v659 = vsub.f32 %v657, %v658
  %v661 = vperm.slane %v656, 0
  %v663 = vmul.f32 %v545, %v661
  %v664 = vmul.f32 %v546, %v661
  %v665 = vmul.f32 %v547, %v661
  %v666 = vmul.f32 %v548, %v661
  %v667 = vmul.f32 %v549, %v661
  %v668 = vmul.f32 %v550, %v661
  %v669 = vmul.f32 %v551, %v661
  %v670 = vmul.f32 %v552, %v661
  %v671 = vmul.f32 %v553, %v661
  %v672 = vmul.f32 %v554, %v661
  %v673 = vmul.f32 %v555, %v661
  %v674 = vmul.f32 %v556, %v661
  %v675 = vmul.f32 %v557, %v661
  %v676 = vmul.f32 %v558, %v661
  %v677 = vmul.f32 %v559, %v661
  %v678 = vmul.f32 %v560, %v661
  %v680 = vperm.slane %v659, 0
  %v682 = vadd.f32 %v663, %v680
  %v683 = vadd.f32 %v664, %v680
  %v684 = vadd.f32 %v665, %v680
  %v685 = vadd.f32 %v666, %v680
  %v686 = vadd.f32 %v667, %v680
  %v687 = vadd.f32 %v668, %v680
  %v688 = vadd.f32 %v669, %v680
  %v689 = vadd.f32 %v670, %v680
  %v690 = vadd.f32 %v671, %v680
  %v691 = vadd.f32 %v672, %v680
  %v692 = vadd.f32 %v673, %v680
  %v693 = vadd.f32 %v674, %v680
  %v694 = vadd.f32 %v675, %v680
  %v695 = vadd.f32 %v676, %v680
  %v696 = vadd.f32 %v677, %v680
  %v697 = vadd.f32 %v678, %v680
  %v698 = vmax.f32 %v682, 0.0
  %v699 = vmax.f32 %v683, 0.0
  %v700 = vmax.f32 %v684, 0.0
  %v701 = vmax.f32 %v685, 0.0
  %v702 = vmax.f32 %v686, 0.0
  %v703 = vmax.f32 %v687, 0.0
  %v704 = vmax.f32 %v688, 0.0
  %v705 = vmax.f32 %v689, 0.0
  %v706 = vmax.f32 %v690, 0.0
  %v707 = vmax.f32 %v691, 0.0
  %v708 = vmax.f32 %v692, 0.0
  %v709 = vmax.f32 %v693, 0.0
  %v710 = vmax.f32 %v694, 0.0
  %v711 = vmax.f32 %v695, 0.0
  %v712 = vmax.f32 %v696, 0.0
  %v713 = vmax.f32 %v697, 0.0
  %714 = vst [vmem:[%s5] sm:$0xff] %v698
  %715 = vst [vmem:[%s5 + $0x8] sm:$0xff] %v699
  %716 = vst [vmem:[%s5 + $0x10] sm:$0xff] %v700
  %717 = vst [vmem:[%s5 + $0x18] sm:$0xff] %v701
  %718 = vst [vmem:[%s5 + $0x20] sm:$0xff] %v702
  %719 = vst [vmem:[%s5 + $0x28] sm:$0xff] %v703
  %720 = vst [vmem:[%s5 + $0x30] sm:$0xff] %v704
  %721 = vst [vmem:[%s5 + $0x38] sm:$0xff] %v705
  %722 = vst [vmem:[%s5 + $0x40] sm:$0xff] %v706
  %723 = vst [vmem:[%s5 + $0x48] sm:$0xff] %v707
  %724 = vst [vmem:[%s5 + $0x50] sm:$0xff] %v708
  %725 = vst [vmem:[%s5 + $0x58] sm:$0xff] %v709
  %726 = vst [vmem:[%s5 + $0x60] sm:$0xff] %v710
  %727 = vst [vmem:[%s5 + $0x68] sm:$0xff] %v711
  %728 = vst [vmem:[%s5 + $0x70] sm:$0xff] %v712
  %729 = vst [vmem:[%s5 + $0x78] sm:$0xff] %v713
  // Predicated region
  $region22: #{cnn_block_forward.1} parent=0 // pred_check
    _
  $region23: #{cnn_block_forward.1} parent=0 // pred_check_branch
    %731 = sbr.rel (0) target = $region25
  $region24: #{cnn_block_forward.1} parent=0 // pred_region
    _
  $region25: #{cnn_block_forward.1} parent=0 // pred_fallthru
    _
  // Predicated region
  $region26: #{cnn_block_forward.1} parent=0 // pred_check
    _
  $region27: #{cnn_block_forward.1} parent=0 // pred_check_branch
    %733 = sbr.rel (0) target = $region29
  $region28: #{cnn_block_forward.1} parent=0 // pred_region
    _
  $region29: #{cnn_block_forward.1} parent=0 // pred_fallthru
    _

</llo_original>
